<compile_context>
chip_gen: v7x
topology: tpu7x:2x2x1
jax: 0.10.0
libtpu: 0.0.40
codegen_flags: <defaults>
</compile_context>

<pallas_src>
import functools

import jax
import jax.numpy as jnp
from jax.experimental import pallas as pl
from jax.experimental.pallas import tpu as pltpu

HIDDEN = 32
LANE = 128          # batch tile must be a multiple of the lane width
OUT_SUBLANES = 8    # n_actions zero-padded up to one sublane group


def _round_up(n, m):
    return ((n + m - 1) // m) * m


def dqn_kernel(x_ref, w1a_ref, w2a_ref, w3a_ref, o_ref, *, n_obs):
    """Transposed dataflow: batch along lanes.

    x_ref  : (n_obs, TB)       f32   transposed input tile
    w1a_ref: (HIDDEN, LANE)    f32   cols [0,n_obs)=W1^T, col n_obs=b1,
                                     col n_obs+1=b2, col n_obs+2=b3 (padded)
    w2a_ref: (HIDDEN, HIDDEN)  bf16  W2^T
    w3a_ref: (8, HIDDEN)       bf16  W3^T zero-padded to 8 rows
    o_ref  : (8, TB)           f32   Q-values^T (rows >= n_actions are padding)
    """
    x = x_ref[...]                                    # (n_obs, TB) f32
    w1a = w1a_ref[...]                                # (HIDDEN, LANE) f32

    b1 = w1a[:, n_obs:n_obs + 1]                      # (HIDDEN, 1) f32
    b2 = w1a[:, n_obs + 1:n_obs + 2]                  # (HIDDEN, 1) f32
    b3 = w1a[:OUT_SUBLANES, n_obs + 2:n_obs + 3]      # (8, 1) f32

    # ---- Layer 1 on the VPU: K = n_obs is tiny, an MXU push/pop would be
    # pure latency.  h1^T = b1 + sum_k W1^T[:, k] (outer) x^T[k, :], all f32.
    h1 = b1
    for k in range(n_obs):                            # static unroll (n_obs = 2)
        h1 = h1 + w1a[:, k:k + 1] * x[k:k + 1, :]
    h1 = jnp.maximum(h1, 0.0)                         # (HIDDEN, TB) f32

    # ---- Layer 2 on the MXU: bf16 x bf16 -> f32 accumulate, f32 epilogue.
    h2 = jnp.dot(w2a_ref[...], h1.astype(jnp.bfloat16),
                 preferred_element_type=jnp.float32)
    h2 = jnp.maximum(h2 + b2, 0.0)                    # (HIDDEN, TB) f32

    # ---- Layer 3 on the MXU: (8, HIDDEN) @ (HIDDEN, TB) -> lane-dense (8, TB).
    out = jnp.dot(w3a_ref[...], h2.astype(jnp.bfloat16),
                  preferred_element_type=jnp.float32)
    o_ref[...] = (out + b3).astype(o_ref.dtype)


def init_dqn_params(key, n_observations, n_actions, hidden=HIDDEN):
    """PyTorch-Linear-style init: U(-1/sqrt(fan_in), 1/sqrt(fan_in)).

    Weights stored as (in_features, out_features); biases (1, out_features)."""
    ks = jax.random.split(key, 6)

    def linear(kw, kb, fan_in, fan_out):
        bound = 1.0 / jnp.sqrt(jnp.float32(fan_in))
        w = jax.random.uniform(kw, (fan_in, fan_out), jnp.float32, -bound, bound)
        b = jax.random.uniform(kb, (1, fan_out), jnp.float32, -bound, bound)
        return w, b

    w1, b1 = linear(ks[0], ks[1], n_observations, hidden)
    w2, b2 = linear(ks[2], ks[3], hidden, hidden)
    w3, b3 = linear(ks[4], ks[5], hidden, n_actions)
    return {"w1": w1, "b1": b1, "w2": w2, "b2": b2, "w3": w3, "b3": b3}


def prepare_params(params, n_obs, n_actions, hidden=HIDDEN):
    """Pack parameters into 3 resident buffers for the transposed dataflow.

    w1a: (hidden, LANE)   f32   W1^T in cols [0,n_obs), biases b1/b2/b3 in
                                cols n_obs, n_obs+1, n_obs+2 (b3 row-padded).
    w2a: (hidden, hidden) bf16  W2^T (MXU layer 2).
    w3a: (8, hidden)      bf16  W3^T zero-padded to 8 output rows (MXU layer 3).
    """
    w1, b1 = params["w1"], params["b1"]
    w2, b2 = params["w2"], params["b2"]
    w3, b3 = params["w3"], params["b3"]

    assert n_obs + 3 <= LANE and n_actions <= OUT_SUBLANES <= hidden

    b3_col = jnp.zeros((hidden,), jnp.float32).at[:n_actions].set(b3.reshape(-1))
    w1a = jnp.zeros((hidden, LANE), jnp.float32)
    w1a = w1a.at[:, :n_obs].set(w1.T)
    w1a = w1a.at[:, n_obs].set(b1.reshape(-1))
    w1a = w1a.at[:, n_obs + 1].set(b2.reshape(-1))
    w1a = w1a.at[:, n_obs + 2].set(b3_col)

    w2a = w2.T.astype(jnp.bfloat16)

    w3a = jnp.zeros((OUT_SUBLANES, hidden), jnp.float32)
    w3a = w3a.at[:n_actions].set(w3.T)
    w3a = w3a.astype(jnp.bfloat16)

    return w1a, w2a, w3a


def _choose_tile(batch, block_b):
    """Lane-multiple batch tile; force >= 2 grid steps when batch allows (v7x)."""
    b_min = _round_up(max(batch, 1), LANE)
    tb = min(_round_up(block_b, LANE), b_min)
    if b_min >= 2 * LANE and tb == b_min:
        # A single mega-tile would leave one v7x TensorCore idle.
        tb = _round_up(b_min // 2, LANE)
    b_pad = _round_up(b_min, tb)
    return tb, b_pad


def dqn_forward(x, packed, n_actions, *, block_b=2048):
    """x: (B, n_observations) f32; packed: output of prepare_params()."""
    w1a, w2a, w3a = packed
    B, n_obs = x.shape
    hidden = w2a.shape[0]

    tb, b_pad = _choose_tile(B, block_b)
    grid = (b_pad // tb,)

    # Transposed, lane-dense input layout (n_obs, b_pad).  Cheap: 8 B/row.
    x_t = jnp.zeros((n_obs, b_pad), x.dtype).at[:, :B].set(x.T)

    flops = 2 * b_pad * (n_obs * hidden + hidden * hidden + hidden * OUT_SUBLANES)
    bytes_accessed = (x_t.size * 4 + w1a.size * 4 + w2a.size * 2 + w3a.size * 2
                      + b_pad * OUT_SUBLANES * 4)

    out_t = pl.pallas_call(
        functools.partial(dqn_kernel, n_obs=n_obs),
        out_shape=jax.ShapeDtypeStruct((OUT_SUBLANES, b_pad), jnp.float32),
        grid_spec=pltpu.PrefetchScalarGridSpec(
            num_scalar_prefetch=0,
            grid=grid,
            in_specs=[
                pl.BlockSpec((n_obs, tb), lambda i: (0, i)),   # batch-tiled x^T
                pl.BlockSpec(w1a.shape, lambda i: (0, 0)),     # params stay resident
                pl.BlockSpec(w2a.shape, lambda i: (0, 0)),
                pl.BlockSpec(w3a.shape, lambda i: (0, 0)),
            ],
            out_specs=pl.BlockSpec((OUT_SUBLANES, tb), lambda i: (0, i)),
        ),
        compiler_params=pltpu.CompilerParams(
            dimension_semantics=("parallel",),        # v7x: shard batch over 2 TCs
            vmem_limit_bytes=32 * 1024 * 1024,        # safe on v5e/v6e/v7x
        ),
        cost_estimate=pl.CostEstimate(
            flops=flops, transcendentals=0, bytes_accessed=bytes_accessed),
    )(x_t, w1a, w2a, w3a)

    # Tiny epilogue: (8, b_pad) -> (B, n_actions); ~16x smaller than the old
    # (b_pad, 128) slice, and padded rows/cols never leave the kernel widened.
    return out_t[:n_actions, :B].T


def dqn_reference_f32(x, p):
    """Plain-JAX, full-f32 reference (PyTorch-equivalent forward)."""
    h1 = jnp.maximum(x @ p["w1"] + p["b1"], 0.0)
    h2 = jnp.maximum(h1 @ p["w2"] + p["b2"], 0.0)
    return h2 @ p["w3"] + p["b3"]


def dqn_reference_packed(x, packed, n_obs, n_actions):
    """Reference replicating the kernel's bf16 weight/activation rounding."""
    w1a, w2a, w3a = packed
    w1 = w1a[:, :n_obs].T
    b1 = w1a[:, n_obs]
    b2 = w1a[:, n_obs + 1]
    b3 = w1a[:n_actions, n_obs + 2]
    w2 = w2a.astype(jnp.float32).T
    w3 = w3a.astype(jnp.float32).T[:, :n_actions]
    h1 = jnp.maximum(x @ w1 + b1, 0.0)
    h1q = h1.astype(jnp.bfloat16).astype(jnp.float32)
    h2 = jnp.maximum(h1q @ w2 + b2, 0.0)
    h2q = h2.astype(jnp.bfloat16).astype(jnp.float32)
    return h2q @ w3 + b3


if __name__ == "__main__":
    # MountainCar-v0: n_observations = 2 (position, velocity), n_actions = 3.
    n_observations, n_actions, batch = 2, 3, 8

    key = jax.random.PRNGKey(0)
    k_params, k_x, k_x2 = jax.random.split(key, 3)
    params = init_dqn_params(k_params, n_observations, n_actions)
    packed = prepare_params(params, n_observations, n_actions)

    fwd = jax.jit(functools.partial(dqn_forward, n_actions=n_actions))

    # --- Small-batch check (single grid step). ---
    x = jax.random.normal(k_x, (batch, n_observations), dtype=jnp.float32)
    out = jax.block_until_ready(fwd(x, packed))
    assert out.shape == (batch, n_actions)

    # Strict check vs a reference reproducing the kernel's bf16 quantization.
    ref_q = dqn_reference_packed(x, packed, n_observations, n_actions)
    assert jnp.allclose(out, ref_q, atol=1e-4, rtol=1e-4), "mismatch vs quantized reference"

    # Loose sanity check vs the full-f32 PyTorch-equivalent forward.
    ref = dqn_reference_f32(x, params)
    assert jnp.allclose(out, ref, atol=5e-2, rtol=5e-2), "mismatch vs f32 reference"

    # --- Multi-tile check (exercises grid > 1 and batch padding). ---
    fwd_small_tile = jax.jit(
        functools.partial(dqn_forward, n_actions=n_actions, block_b=128))
    x2 = jax.random.normal(k_x2, (300, n_observations), dtype=jnp.float32)
    out2 = jax.block_until_ready(fwd_small_tile(x2, packed))
    assert out2.shape == (300, n_actions)
    ref2_q = dqn_reference_packed(x2, packed, n_observations, n_actions)
    assert jnp.allclose(out2, ref2_q, atol=1e-4, rtol=1e-4), \
        "mismatch vs quantized reference (multi-tile)"

    print("KERNEL_OK")
</pallas_src>

<mosaic_0001>
module attributes {stable_mosaic.version = 11 : i64} {
  func.func @dqn_kernel(%arg0: i32, %arg1: memref<2x128xf32, #tpu.memory_space<vmem>>, %arg2: memref<32x128xf32, #tpu.memory_space<vmem>>, %arg3: memref<32x32xbf16, #tpu.memory_space<vmem>>, %arg4: memref<8x32xbf16, #tpu.memory_space<vmem>>, %arg5: memref<8x128xf32, #tpu.memory_space<vmem>>) attributes {dimension_semantics = [#tpu.dimension_semantics<parallel>], iteration_bounds = array<i64: 1>, scalar_prefetch = 0 : i64, scratch_operands = 0 : i64, tpu.core_type = #tpu.core_type<tc>, window_params = [{transform_indices = @transform_0, window_bounds = array<i64: 2, 128>}, {pipeline_mode = #tpu.pipeline_mode<synchronous>, transform_indices = @transform_1, window_bounds = array<i64: 32, 128>}, {pipeline_mode = #tpu.pipeline_mode<synchronous>, transform_indices = @transform_2, window_bounds = array<i64: 32, 32>}, {pipeline_mode = #tpu.pipeline_mode<synchronous>, transform_indices = @transform_3, window_bounds = array<i64: 8, 32>}, {transform_indices = @transform_4, window_bounds = array<i64: 8, 128>}]} {
    %c0 = arith.constant 0 : index
    %c0_0 = arith.constant 0 : index
    %0 = vector.load %arg1[%c0, %c0_0] : memref<2x128xf32, #tpu.memory_space<vmem>>, vector<2x128xf32>
    %c0_1 = arith.constant 0 : index
    %c0_2 = arith.constant 0 : index
    %1 = vector.load %arg2[%c0_1, %c0_2] : memref<32x128xf32, #tpu.memory_space<vmem>>, vector<32x128xf32>
    %2 = vector.extract_strided_slice %1 {offsets = [0, 2], sizes = [32, 1], strides = [1, 1]} : vector<32x128xf32> to vector<32x1xf32>
    %3 = vector.extract_strided_slice %1 {offsets = [0, 3], sizes = [32, 1], strides = [1, 1]} : vector<32x128xf32> to vector<32x1xf32>
    %4 = vector.extract_strided_slice %1 {offsets = [0, 4], sizes = [8, 1], strides = [1, 1]} : vector<32x128xf32> to vector<8x1xf32>
    %5 = vector.extract_strided_slice %1 {offsets = [0, 0], sizes = [32, 1], strides = [1, 1]} : vector<32x128xf32> to vector<32x1xf32>
    %6 = vector.extract_strided_slice %0 {offsets = [0, 0], sizes = [1, 128], strides = [1, 1]} : vector<2x128xf32> to vector<1x128xf32>
    %7 = vector.broadcast %5 : vector<32x1xf32> to vector<32x128xf32>
    %8 = vector.broadcast %6 : vector<1x128xf32> to vector<32x128xf32>
    %9 = arith.mulf %7, %8 : vector<32x128xf32>
    %10 = vector.broadcast %2 : vector<32x1xf32> to vector<32x128xf32>
    %11 = arith.addf %10, %9 : vector<32x128xf32>
    %12 = vector.extract_strided_slice %1 {offsets = [0, 1], sizes = [32, 1], strides = [1, 1]} : vector<32x128xf32> to vector<32x1xf32>
    %13 = vector.extract_strided_slice %0 {offsets = [1, 0], sizes = [1, 128], strides = [1, 1]} : vector<2x128xf32> to vector<1x128xf32>
    %14 = vector.broadcast %12 : vector<32x1xf32> to vector<32x128xf32>
    %15 = vector.broadcast %13 : vector<1x128xf32> to vector<32x128xf32>
    %16 = arith.mulf %14, %15 : vector<32x128xf32>
    %17 = arith.addf %11, %16 : vector<32x128xf32>
    %cst = arith.constant 0.000000e+00 : f32
    %18 = vector.broadcast %cst : f32 to vector<32x128xf32>
    %19 = arith.maximumf %17, %18 : vector<32x128xf32>
    %c0_3 = arith.constant 0 : index
    %c0_4 = arith.constant 0 : index
    %20 = vector.load %arg3[%c0_3, %c0_4] : memref<32x32xbf16, #tpu.memory_space<vmem>>, vector<32x32xbf16>
    %21 = arith.truncf %19 : vector<32x128xf32> to vector<32x128xbf16>
    %cst_5 = arith.constant dense<0.000000e+00> : vector<32x128xf32>
    %22 = tpu.matmul %20, %21, %cst_5 {dimension_numbers = #tpu.dot_dimension_numbers<[1], [0], [0], [1], [0, 0, 1, 1], [], []>} : vector<32x32xbf16>, vector<32x128xbf16>, vector<32x128xf32> -> vector<32x128xf32>
    %23 = vector.broadcast %3 : vector<32x1xf32> to vector<32x128xf32>
    %24 = arith.addf %22, %23 : vector<32x128xf32>
    %cst_6 = arith.constant 0.000000e+00 : f32
    %25 = vector.broadcast %cst_6 : f32 to vector<32x128xf32>
    %26 = arith.maximumf %24, %25 : vector<32x128xf32>
    %c0_7 = arith.constant 0 : index
    %c0_8 = arith.constant 0 : index
    %27 = vector.load %arg4[%c0_7, %c0_8] : memref<8x32xbf16, #tpu.memory_space<vmem>>, vector<8x32xbf16>
    %28 = arith.truncf %26 : vector<32x128xf32> to vector<32x128xbf16>
    %cst_9 = arith.constant dense<0.000000e+00> : vector<8x128xf32>
    %29 = tpu.matmul %27, %28, %cst_9 {dimension_numbers = #tpu.dot_dimension_numbers<[1], [0], [0], [1], [0, 0, 1, 1], [], []>} : vector<8x32xbf16>, vector<32x128xbf16>, vector<8x128xf32> -> vector<8x128xf32>
    %30 = vector.broadcast %4 : vector<8x1xf32> to vector<8x128xf32>
    %31 = arith.addf %29, %30 : vector<8x128xf32>
    %c0_10 = arith.constant 0 : index
    %c0_11 = arith.constant 0 : index
    %32 = vector.load %arg5[%c0_10, %c0_11] : memref<8x128xf32, #tpu.memory_space<vmem>>, vector<8x128xf32>
    tpu.vector_store %arg5[%c0_10, %c0_11], %31 {strides = array<i32>} : memref<8x128xf32, #tpu.memory_space<vmem>>, vector<8x128xf32>,
    return
  }
  func.func @transform_0(%arg0: i32) -> (i32, i32) {
    %c0_i32 = arith.constant 0 : i32
    %c0_i32_0 = arith.constant 0 : i32
    return %c0_i32, %arg0 : i32, i32
  }
  func.func @transform_1(%arg0: i32) -> (i32, i32) {
    %c0_i32 = arith.constant 0 : i32
    %c0_i32_0 = arith.constant 0 : i32
    %c0_i32_1 = arith.constant 0 : i32
    return %c0_i32, %c0_i32_0 : i32, i32
  }
  func.func @transform_2(%arg0: i32) -> (i32, i32) {
    %c0_i32 = arith.constant 0 : i32
    %c0_i32_0 = arith.constant 0 : i32
    %c0_i32_1 = arith.constant 0 : i32
    return %c0_i32, %c0_i32_0 : i32, i32
  }
  func.func @transform_3(%arg0: i32) -> (i32, i32) {
    %c0_i32 = arith.constant 0 : i32
    %c0_i32_0 = arith.constant 0 : i32
    %c0_i32_1 = arith.constant 0 : i32
    return %c0_i32, %c0_i32_0 : i32, i32
  }
  func.func @transform_4(%arg0: i32) -> (i32, i32) {
    %c0_i32 = arith.constant 0 : i32
    %c0_i32_0 = arith.constant 0 : i32
    return %c0_i32, %arg0 : i32, i32
  }
}

</mosaic_0001>

<llo_original>
// kernel: dqn_forward.1
$region0: #{dqn_forward.1}
  #allocation0 [shape = 'u32[]', space=smem, size = 0x4, offset = 0x4, fixed_abs, tag = 'smem constant byte address 0x4 - core index']
  #allocation1 [shape = 'u32[144,128]{1,0:T(1,128)}', space=vmem, size = 0x12000, scoped, tag = 'internal scratch']
  %s0 = inlined_call_operand.vmem [shape: f32[2,128], index: 0, kind: input, shape index: {}]
  %s1 = inlined_call_operand.hbm [shape: f32[32,128], index: 1, kind: input, shape index: {}]
  %s2 = inlined_call_operand.vmem [shape: bf16[32,32], index: 2, kind: input, shape index: {}]
  %s3 = inlined_call_operand.vmem [shape: bf16[8,32], index: 3, kind: input, shape index: {}]
  %s4 = inlined_call_operand.vmem [shape: f32[8,128], index: 4, kind: output, shape index: {}]
  %s5 = sld [smem:[#allocation0]]
  $region30: #{dqn_forward.1} parent=0
    _
  %s7 = ssub.s32 1, %s5
  %s8 = scalar_select 0, %s7, %s5
  $region1: #{dqn_forward.1} parent=0
    #allocation2 [shape = 'u8[16384]{0}', space=vmem, size = 0x4000, scoped, tag = 'input window, operand 1, single buffered']
    #allocation3 [shape = 's32[1]{0}', space=sflag, size = 0x4, scoped, tag = 'scoped memory for dqn_forward.1']
    %9 = vsyncpa [#allocation3], 0
    // Predicated region
    $region2: #{dqn_forward.1} parent=1 // pred_check
      _
    $region3: #{dqn_forward.1} parent=1 // pred_check_branch
      %11 = sbr.rel (0) target = $region5
    $region4: #{dqn_forward.1} parent=1 // pred_region
      _
    $region5: #{dqn_forward.1} parent=1 // pred_fallthru
      _
    // Predicated region
    $region6: #{dqn_forward.1} parent=1 // pred_check
      _
    $region7: #{dqn_forward.1} parent=1 // pred_check_branch
      %13 = sbr.rel (0) target = $region9
    $region8: #{dqn_forward.1} parent=1 // pred_region
      %s15 = ssub.s32 512, 512
      %16 = vsyncadd [#allocation3], %s15
      %s17 = sshll.u32 [#allocation2], 4
      %s18 = int_to_ptr.vmem [resolvable:$true] %s17
      %23 = dma.hbm_to_vmem [thread:$0]  %s1, 512, %s18, [#allocation3], 128, 128, 8
    $region9: #{dqn_forward.1} parent=1 // pred_fallthru
      _
    // Predicated region
    $region10: #{dqn_forward.1} parent=1 // pred_check
      _
    $region11: #{dqn_forward.1} parent=1 // pred_check_branch
      %25 = sbr.rel (0) target = $region13
    $region12: #{dqn_forward.1} parent=1 // pred_region
      _
    $region13: #{dqn_forward.1} parent=1 // pred_fallthru
      _
    // Predicated region
    $region14: #{dqn_forward.1} parent=1 // pred_check
      _
    $region15: #{dqn_forward.1} parent=1 // pred_check_branch
      %27 = sbr.rel (0) target = $region17
    $region16: #{dqn_forward.1} parent=1 // pred_region
      _
    $region17: #{dqn_forward.1} parent=1 // pred_fallthru
      _
    // Predicated region
    $region18: #{dqn_forward.1} parent=1 // pred_check
      _
    $region19: #{dqn_forward.1} parent=1 // pred_check_branch
      %29 = sbr.rel (0) target = $region21
    $region20: #{dqn_forward.1} parent=1 // pred_region
      %30 = dma.done [#allocation3], 512
    $region21: #{dqn_forward.1} parent=1 // pred_fallthru
      _
    %v32 = vld [vmem:[%s0] sm:$0x3]
    %v33 = vld [vmem:[#allocation2] sm:$0xff]
    %v34 = vld [vmem:[#allocation2 + $0x8] sm:$0xff]
    %v35 = vld [vmem:[#allocation2 + $0x10] sm:$0xff]
    %v36 = vld [vmem:[#allocation2 + $0x18] sm:$0xff]
    %38 = vset.pattern.permute.xlu0 0
    %39 = vperm.xlu0 %38, %v33
    %v40 = vpop.permute.xlu0 %39
    %43 = vset.pattern.permute.xlu0 0
    %44 = vperm.xlu0 %43, %v34
    %v45 = vpop.permute.xlu0 %44
    %48 = vset.pattern.permute.xlu0 0
    %49 = vperm.xlu0 %48, %v35
    %v50 = vpop.permute.xlu0 %49
    %53 = vset.pattern.permute.xlu0 0
    %54 = vperm.xlu0 %53, %v36
    %v55 = vpop.permute.xlu0 %54
    %v57 = vlaneseq
    %v58 = vshrl.u32 %v57, 7
    %v59 = vsub.s32 0, %v58
    %v60 = vrot.slane %v32, %v59
    %v61 = vmul.f32 %v40, %v60
    %v62 = vmul.f32 %v45, %v60
    %v63 = vmul.f32 %v50, %v60
    %v64 = vmul.f32 %v55, %v60
    %65 = vset.pattern.permute.xlu0 2
    %66 = vperm.xlu0 %65, %v33
    %v67 = vpop.permute.xlu0 %66
    %69 = vset.pattern.permute.xlu0 2
    %70 = vperm.xlu0 %69, %v34
    %v71 = vpop.permute.xlu0 %70
    %73 = vset.pattern.permute.xlu0 2
    %74 = vperm.xlu0 %73, %v35
    %v75 = vpop.permute.xlu0 %74
    %77 = vset.pattern.permute.xlu0 2
    %78 = vperm.xlu0 %77, %v36
    %v79 = vpop.permute.xlu0 %78
    %v81 = vadd.f32 %v67, %v61
    %v82 = vadd.f32 %v71, %v62
    %v83 = vadd.f32 %v75, %v63
    %v84 = vadd.f32 %v79, %v64
    %85 = vset.pattern.permute.xlu0 1
    %86 = vperm.xlu0 %85, %v33
    %v87 = vpop.permute.xlu0 %86
    %89 = vset.pattern.permute.xlu0 1
    %90 = vperm.xlu0 %89, %v34
    %v91 = vpop.permute.xlu0 %90
    %93 = vset.pattern.permute.xlu0 1
    %94 = vperm.xlu0 %93, %v35
    %v95 = vpop.permute.xlu0 %94
    %97 = vset.pattern.permute.xlu0 1
    %98 = vperm.xlu0 %97, %v36
    %v99 = vpop.permute.xlu0 %98
    %v101 = vlaneseq
    %v102 = vshrl.u32 %v101, 7
    %v103 = vsub.s32 1, %v102
    %v104 = vrot.slane %v32, %v103
    %v105 = vmul.f32 %v87, %v104
    %v106 = vmul.f32 %v91, %v104
    %v107 = vmul.f32 %v95, %v104
    %v108 = vmul.f32 %v99, %v104
    %v109 = vadd.f32 %v81, %v105
    %v110 = vadd.f32 %v82, %v106
    %v111 = vadd.f32 %v83, %v107
    %v112 = vadd.f32 %v84, %v108
    %v113 = vmax.f32 %v109, 0.0
    %v114 = vmax.f32 %v110, 0.0
    %v115 = vmax.f32 %v111, 0.0
    %v116 = vmax.f32 %v112, 0.0
    %v117 = vld [vmem:[%s2] sm:$0xf]
    %v118 = vld [vmem:[%s2 + $0x4] sm:$0xf]
    %v119 = vld [vmem:[%s2 + $0x8] sm:$0xf]
    %v120 = vld [vmem:[%s2 + $0xc] sm:$0xf]
    %v121 = vpack.c.bf16 %v114, %v113
    %v122 = vpack.c.bf16 %v116, %v115
    %123 = vset.pattern.permute.xlu0 3
    %124 = vperm.xlu0 %123, %v33
    %v125 = vpop.permute.xlu0 %124
    %127 = vset.pattern.permute.xlu0 3
    %128 = vperm.xlu0 %127, %v34
    %v129 = vpop.permute.xlu0 %128
    %131 = vset.pattern.permute.xlu0 3
    %132 = vperm.xlu0 %131, %v35
    %v133 = vpop.permute.xlu0 %132
    %135 = vset.pattern.permute.xlu0 3
    %136 = vperm.xlu0 %135, %v36
    %v137 = vpop.permute.xlu0 %136
    %v143 = vunpack.c.l.b16 %v117
    %v144 = vunpack.c.l.b16 %v118
    %v145 = vunpack.c.l.b16 %v119
    %v146 = vunpack.c.l.b16 %v120
    %v147 = vpack.c.b16 %v144, %v143
    %v148 = vpack.c.b16 %v146, %v145
    %vm149 = vcmask 261120
    %v151 = vsel %vm149, %v147, 0
    %v154 = vsel %vm149, %v148, 0
    %156 = vmatprep.subr.bf16.mxu0 0
    %157 = vmatpush1.bf16.msra.mxu0 %v121
    %158 = vmatprep.subr.bf16.mxu0 0
    %159 = vmatpush1.bf16.msra.mxu0 %v122
    %160 = vmatprep.subr.bf16.mxu0 0
    %161 = vmatpush1.bf16.msra.mxu0 0
    %162 = vmatprep.subr.bf16.mxu0 0
    %163 = vmatpush1.bf16.msra.mxu0 0
    %164 = vmatprep.subr.bf16.mxu0 0
    %165 = vmatpush1.bf16.msra.mxu0 0
    %166 = vmatprep.subr.bf16.mxu0 0
    %167 = vmatpush1.bf16.msra.mxu0 0
    %168 = vmatprep.subr.bf16.mxu0 0
    %169 = vmatpush1.bf16.msra.mxu0 0
    %170 = vmatprep.subr.bf16.mxu0 0
    %171 = vmatpush1.bf16.msra.mxu0 0
    %172 = vmatprep.subr.bf16.mxu0 0
    %173 = vmatpush1.bf16.msra.mxu0 0
    %174 = vmatprep.subr.bf16.mxu0 0
    %175 = vmatpush1.bf16.msra.mxu0 0
    %176 = vmatprep.subr.bf16.mxu0 0
    %177 = vmatpush1.bf16.msra.mxu0 0
    %178 = vmatprep.subr.bf16.mxu0 0
    %179 = vmatpush1.bf16.msra.mxu0 0
    %180 = vmatprep.subr.bf16.mxu0 0
    %181 = vmatpush1.bf16.msra.mxu0 0
    %182 = vmatprep.subr.bf16.mxu0 0
    %183 = vmatpush1.bf16.msra.mxu0 0
    %184 = vmatprep.subr.bf16.mxu0 0
    %185 = vmatpush1.bf16.msra.mxu0 0
    %186 = vmatprep.subr.bf16.mxu0 0
    %187 = vmatpush1.bf16.msra.mxu0 0
    %188 = vmatprep.mubr.bf16.mxu0 0
    %189 = vmatmul.mubr.bf16.gmra.mrb[0].mxu0 %v151
    %v190 = vpop.f32.mrb[0].mxu0
    %v191 = vadd.f32 %v125, %v190
    %v192 = vpop.f32.mrb[0].mxu0
    %v193 = vpop.f32.mrb[0].mxu0
    %v194 = vadd.f32 %v129, %v193
    %v195 = vpop.f32.mrb[0].mxu0
    %196 = vmatprep.mubr.bf16.mxu0 0
    %197 = vmatmul.mubr.bf16.gmra.mrb[0].mxu0 %v154
    %v198 = vpop.f32.mrb[0].mxu0
    %v199 = vadd.f32 %v133, %v198
    %v200 = vpop.f32.mrb[0].mxu0
    %v201 = vpop.f32.mrb[0].mxu0
    %v202 = vadd.f32 %v137, %v201
    %v203 = vpop.f32.mrb[0].mxu0
    %204 = vdwg.mxu0
    %v205 = vmax.f32 %v191, 0.0
    %v206 = vmax.f32 %v194, 0.0
    %v207 = vmax.f32 %v199, 0.0
    %v208 = vmax.f32 %v202, 0.0
    %v209 = vld [vmem:[%s3] sm:$0xf]
    %v210 = vpack.c.bf16 %v206, %v205
    %v211 = vpack.c.bf16 %v208, %v207
    %212 = vset.pattern.permute.xlu0 4
    %213 = vperm.xlu0 %212, %v33
    %v214 = vpop.permute.xlu0 %213
    %v217 = vsel %vm149, %v209, 0
    %219 = vmatprep.subr.bf16.mxu0 0
    %220 = vmatpush1.bf16.msra.mxu0 %v210
    %221 = vmatprep.subr.bf16.mxu0 0
    %222 = vmatpush1.bf16.msra.mxu0 %v211
    %223 = vmatprep.subr.bf16.mxu0 0
    %224 = vmatpush1.bf16.msra.mxu0 0
    %225 = vmatprep.subr.bf16.mxu0 0
    %226 = vmatpush1.bf16.msra.mxu0 0
    %227 = vmatprep.subr.bf16.mxu0 0
    %228 = vmatpush1.bf16.msra.mxu0 0
    %229 = vmatprep.subr.bf16.mxu0 0
    %230 = vmatpush1.bf16.msra.mxu0 0
    %231 = vmatprep.subr.bf16.mxu0 0
    %232 = vmatpush1.bf16.msra.mxu0 0
    %233 = vmatprep.subr.bf16.mxu0 0
    %234 = vmatpush1.bf16.msra.mxu0 0
    %235 = vmatprep.subr.bf16.mxu0 0
    %236 = vmatpush1.bf16.msra.mxu0 0
    %237 = vmatprep.subr.bf16.mxu0 0
    %238 = vmatpush1.bf16.msra.mxu0 0
    %239 = vmatprep.subr.bf16.mxu0 0
    %240 = vmatpush1.bf16.msra.mxu0 0
    %241 = vmatprep.subr.bf16.mxu0 0
    %242 = vmatpush1.bf16.msra.mxu0 0
    %243 = vmatprep.subr.bf16.mxu0 0
    %244 = vmatpush1.bf16.msra.mxu0 0
    %245 = vmatprep.subr.bf16.mxu0 0
    %246 = vmatpush1.bf16.msra.mxu0 0
    %247 = vmatprep.subr.bf16.mxu0 0
    %248 = vmatpush1.bf16.msra.mxu0 0
    %249 = vmatprep.subr.bf16.mxu0 0
    %250 = vmatpush1.bf16.msra.mxu0 0
    %251 = vmatprep.mubr.bf16.mxu0 0
    %252 = vmatmul.mubr.bf16.gmra.mrb[0].mxu0 %v217
    %v253 = vpop.f32.mrb[0].mxu0
    %v254 = vadd.f32 %v214, %v253
    %v255 = vpop.f32.mrb[0].mxu0
    %v256 = vpop.f32.mrb[0].mxu0
    %v257 = vpop.f32.mrb[0].mxu0
    %258 = vdwg.mxu0
    %259 = vst [vmem:[%s4] sm:$0xff] %v254
    // Predicated region
    $region22: #{dqn_forward.1} parent=1 // pred_check
      _
    $region23: #{dqn_forward.1} parent=1 // pred_check_branch
      %261 = sbr.rel (0) target = $region25
    $region24: #{dqn_forward.1} parent=1 // pred_region
      _
    $region25: #{dqn_forward.1} parent=1 // pred_fallthru
      _
    // Predicated region
    $region26: #{dqn_forward.1} parent=1 // pred_check
      _
    $region27: #{dqn_forward.1} parent=1 // pred_check_branch
      %263 = sbr.rel (0) target = $region29
    $region28: #{dqn_forward.1} parent=1 // pred_region
      _
    $region29: #{dqn_forward.1} parent=1 // pred_fallthru
      _
    %264 = vsyncpa [#allocation3], 1

</llo_original>
